<compile_context>
chip_gen: v5e
topology: v5e:2x2
jax: 0.10.0
libtpu: 0.0.40
codegen_flags: <defaults>
</compile_context>

<pallas_src>
import jax
import jax.numpy as jnp
from jax.experimental import pallas as pl
from jax.experimental.pallas import tpu as pltpu


def _round_up(x, m):
    return ((x + m - 1) // m) * m


def collab_kernel(u_ref, m_ref, b_ref, o_ref):
    # u_ref / m_ref: (E, TB) bf16 (batch on lanes), b_ref / o_ref: (1, TB) f32.
    u = u_ref[...].astype(jnp.float32)            # upcast on load
    m = m_ref[...].astype(jnp.float32)
    dot = jnp.sum(u * m, axis=0, keepdims=True)   # (1, TB) sublane reduce
    raw = dot + b_ref[...]                        # fused (bias_user + bias_movie)
    o_ref[...] = (jax.nn.sigmoid(raw) * 5.25).astype(o_ref.dtype)


def collab_forward(users, movies, params, *, tb=8192):
    """users, movies: int32 index vectors of shape (B,). Returns (B,) float32."""
    B = users.shape[0]
    E = params["embedding_user"].shape[1]

    # Embedding / bias gathers stay in plain XLA, but the results are produced
    # directly in the lane-dense transposed layout the kernel wants, so the
    # gather, transpose and dtype handling all fuse on the XLA side.
    emb_u = params["embedding_user"][users].T                      # (E, B)
    emb_m = params["embedding_movie"][movies].T                    # (E, B)
    bias = (params["bias_user"][0, users]
            + params["bias_movie"][0, movies]).astype(jnp.float32)[None, :]  # (1, B)
    # TODO(synk): for very large batches with VMEM-resident-sized tables, fuse
    # the gather in-kernel (tables as untiled VMEM inputs + scalar-prefetched
    # indices) to avoid round-tripping the (E, B) intermediates through HBM;
    # on v7x budget tables against the 64 MiB VMEM.

    # Lane-aligned tile (multiple of 128); pad batch so every block is full
    # -> unmasked, lane-dense output stores and no partial final block.
    tb_eff = min(tb, _round_up(B, 128))
    Bp = _round_up(B, tb_eff)
    if Bp != B:
        pad = Bp - B
        emb_u = jnp.pad(emb_u, ((0, 0), (0, pad)))
        emb_m = jnp.pad(emb_m, ((0, 0), (0, pad)))
        bias = jnp.pad(bias, ((0, 0), (0, pad)))

    grid = (Bp // tb_eff,)

    out = pl.pallas_call(
        collab_kernel,
        out_shape=jax.ShapeDtypeStruct((1, Bp), jnp.float32),
        grid_spec=pltpu.PrefetchScalarGridSpec(
            num_scalar_prefetch=0,
            grid=grid,
            in_specs=[
                pl.BlockSpec((E, tb_eff), lambda i: (0, i)),
                pl.BlockSpec((E, tb_eff), lambda i: (0, i)),
                pl.BlockSpec((1, tb_eff), lambda i: (0, i)),
            ],
            out_specs=pl.BlockSpec((1, tb_eff), lambda i: (0, i)),
        ),
        compiler_params=pltpu.CompilerParams(
            dimension_semantics=("parallel",)),
    )(emb_u, emb_m, bias)

    return out[0, :B]  # (B,)


def init_params(movie_size, user_size, embedding_size, key,
                emb_dtype=jnp.bfloat16):
    k_m, k_u = jax.random.split(key)
    return {
        # torch.nn.Embedding default init: N(0, 1); stored bf16 for HBM
        # bandwidth (compute is upcast to f32 in-kernel).
        "embedding_movie": jax.random.normal(
            k_m, (movie_size, embedding_size)).astype(emb_dtype),
        "embedding_user": jax.random.normal(
            k_u, (user_size, embedding_size)).astype(emb_dtype),
        # torch.zeros(...).unsqueeze(0)
        "bias_movie": jnp.zeros((1, movie_size), dtype=jnp.float32),
        "bias_user": jnp.zeros((1, user_size), dtype=jnp.float32),
    }


if __name__ == "__main__":
    movie_size, user_size, embedding_size = 32, 16, 4
    batch = 8

    key = jax.random.PRNGKey(0)
    k_params, k_users, k_movies = jax.random.split(key, 3)

    params = init_params(movie_size, user_size, embedding_size, k_params)
    users = jax.random.randint(k_users, (batch,), 0, user_size, dtype=jnp.int32)
    movies = jax.random.randint(k_movies, (batch,), 0, movie_size, dtype=jnp.int32)

    out = collab_forward(users, movies, params)
    out = jax.block_until_ready(out)

    # Pure-JAX reference check of the same forward semantics (same f32 accum).
    eu = params["embedding_user"][users].astype(jnp.float32)
    em = params["embedding_movie"][movies].astype(jnp.float32)
    raw = (jnp.sum(eu * em, axis=-1)
           + params["bias_movie"][0, movies]
           + params["bias_user"][0, users])
    ref = jax.nn.sigmoid(raw) * 5.25
    assert out.shape == (batch,)
    assert jnp.allclose(out, ref, atol=1e-5, rtol=1e-5)

    print("KERNEL_OK")
</pallas_src>

<mosaic_0001>
module attributes {stable_mosaic.version = 11 : i64} {
  func.func @collab_kernel(%arg0: i32, %arg1: memref<4x128xbf16, #tpu.memory_space<vmem>>, %arg2: memref<4x128xbf16, #tpu.memory_space<vmem>>, %arg3: memref<1x128xf32, #tpu.memory_space<vmem>>, %arg4: memref<1x128xf32, #tpu.memory_space<vmem>>) attributes {dimension_semantics = [#tpu.dimension_semantics<parallel>], iteration_bounds = array<i64: 1>, scalar_prefetch = 0 : i64, scratch_operands = 0 : i64, tpu.core_type = #tpu.core_type<tc>, window_params = [{transform_indices = @transform_0, window_bounds = array<i64: 4, 128>}, {transform_indices = @transform_1, window_bounds = array<i64: 4, 128>}, {transform_indices = @transform_2, window_bounds = array<i64: 1, 128>}, {transform_indices = @transform_3, window_bounds = array<i64: 1, 128>}]} {
    %c0 = arith.constant 0 : index
    %c0_0 = arith.constant 0 : index
    %0 = vector.load %arg1[%c0, %c0_0] : memref<4x128xbf16, #tpu.memory_space<vmem>>, vector<4x128xbf16>
    %1 = arith.extf %0 : vector<4x128xbf16> to vector<4x128xf32>
    %c0_1 = arith.constant 0 : index
    %c0_2 = arith.constant 0 : index
    %2 = vector.load %arg2[%c0_1, %c0_2] : memref<4x128xbf16, #tpu.memory_space<vmem>>, vector<4x128xbf16>
    %3 = arith.extf %2 : vector<4x128xbf16> to vector<4x128xf32>
    %4 = arith.mulf %1, %3 : vector<4x128xf32>
    %cst = arith.constant dense<0.000000e+00> : vector<128xf32>
    %5 = vector.multi_reduction <add>, %4, %cst [0] : vector<4x128xf32> to vector<128xf32>
    %6 = vector.shape_cast %5 : vector<128xf32> to vector<1x128xf32>
    %c0_3 = arith.constant 0 : index
    %c0_4 = arith.constant 0 : index
    %7 = vector.load %arg3[%c0_3, %c0_4] : memref<1x128xf32, #tpu.memory_space<vmem>>, vector<1x128xf32>
    %8 = arith.addf %6, %7 : vector<1x128xf32>
    %9 = arith.negf %8 : vector<1x128xf32>
    %10 = math.exp %9 : vector<1x128xf32>
    %cst_5 = arith.constant 1.000000e+00 : f32
    %11 = vector.broadcast %cst_5 : f32 to vector<1x128xf32>
    %12 = arith.addf %11, %10 : vector<1x128xf32>
    %13 = arith.divf %11, %12 : vector<1x128xf32>
    %cst_6 = arith.constant 5.250000e+00 : f32
    %14 = vector.broadcast %cst_6 : f32 to vector<1x128xf32>
    %15 = arith.mulf %13, %14 : vector<1x128xf32>
    %c0_7 = arith.constant 0 : index
    %c0_8 = arith.constant 0 : index
    %16 = vector.load %arg4[%c0_7, %c0_8] : memref<1x128xf32, #tpu.memory_space<vmem>>, vector<1x128xf32>
    tpu.vector_store %arg4[%c0_7, %c0_8], %15 {strides = array<i32>} : memref<1x128xf32, #tpu.memory_space<vmem>>, vector<1x128xf32>,
    return
  }
  func.func @transform_0(%arg0: i32) -> (i32, i32) {
    %c0_i32 = arith.constant 0 : i32
    %c0_i32_0 = arith.constant 0 : i32
    return %c0_i32, %arg0 : i32, i32
  }
  func.func @transform_1(%arg0: i32) -> (i32, i32) {
    %c0_i32 = arith.constant 0 : i32
    %c0_i32_0 = arith.constant 0 : i32
    return %c0_i32, %arg0 : i32, i32
  }
  func.func @transform_2(%arg0: i32) -> (i32, i32) {
    %c0_i32 = arith.constant 0 : i32
    %c0_i32_0 = arith.constant 0 : i32
    return %c0_i32, %arg0 : i32, i32
  }
  func.func @transform_3(%arg0: i32) -> (i32, i32) {
    %c0_i32 = arith.constant 0 : i32
    %c0_i32_0 = arith.constant 0 : i32
    return %c0_i32, %arg0 : i32, i32
  }
}

</mosaic_0001>

<llo_original>
// kernel: tpu_custom_call.1
$region0: #{tpu_custom_call.1}
  #allocation0 [shape = 'u32[]', space=smem, size = 0x4, offset = 0x4, fixed_abs, tag = 'smem constant byte address 0x4 - core index']
  #allocation1 [shape = 'u32[72,128]{1,0:T(1,128)}', space=vmem, size = 0x9000, scoped, tag = 'internal scratch']
  %s0 = inlined_call_operand.hbm [shape: bf16[4,128], index: 0, kind: input, shape index: {}]
  %s1 = inlined_call_operand.hbm [shape: bf16[4,128], index: 1, kind: input, shape index: {}]
  %s2 = inlined_call_operand.vmem [shape: f32[1,128], index: 2, kind: input, shape index: {}]
  %s3 = inlined_call_operand.hbm [shape: f32[1,128], index: 3, kind: output, shape index: {}]
  %s4 = sld [smem:[#allocation0]]
  $region30: #{tpu_custom_call.1} parent=0
    _
  %s6 = ssub.s32 1, %s4
  %s7 = scalar_select 0, %s6, %s4
  $region1: #{tpu_custom_call.1} parent=0
    #allocation2 [shape = 'u8[1024]{0}', space=vmem, size = 0x400, scoped, tag = 'input window, operand 0, single buffered']
    #allocation3 [shape = 's32[1]{0}', space=sflag, size = 0x4, scoped, tag = 'scoped memory for tpu_custom_call.1']
    #allocation4 [shape = 's32[1]{0}', space=sflag, size = 0x4, scoped, tag = 'scoped memory for tpu_custom_call.1']
    #allocation5 [shape = 'u8[1024]{0}', space=vmem, size = 0x400, scoped, tag = 'input window, operand 1, single buffered']
    #allocation6 [shape = 's32[1]{0}', space=sflag, size = 0x4, scoped, tag = 'scoped memory for tpu_custom_call.1']
    #allocation7 [shape = 'u8[512]{0}', space=vmem, size = 0x400, scoped, tag = 'output window, operand 0, single buffered']
    %8 = vsyncpa [#allocation3], 0
    %9 = vsyncpa [#allocation6], 0
    %10 = vsyncpa [#allocation4], 0
    // Predicated region
    $region2: #{tpu_custom_call.1} parent=1 // pred_check
      _
    $region3: #{tpu_custom_call.1} parent=1 // pred_check_branch
      %12 = sbr.rel (0) target = $region5
    $region4: #{tpu_custom_call.1} parent=1 // pred_region
      %14 = vsyncadd [#allocation3], 0
      %s16 = sshll.u32 %s0, 4
      %s17 = int_to_ptr.hbm [resolvable:$true] %s16
      %s18 = sshll.u32 [#allocation2], 4
      %s19 = int_to_ptr.vmem [resolvable:$true] %s18
      %21 = dma.hbm_to_vmem [thread:$0]  %s17, 32, %s19, [#allocation3]
    $region5: #{tpu_custom_call.1} parent=1 // pred_fallthru
      _
    // Predicated region
    $region6: #{tpu_custom_call.1} parent=1 // pred_check
      _
    $region7: #{tpu_custom_call.1} parent=1 // pred_check_branch
      %23 = sbr.rel (0) target = $region9
    $region8: #{tpu_custom_call.1} parent=1 // pred_region
      %25 = vsyncadd [#allocation6], 0
      %s27 = sshll.u32 %s1, 4
      %s28 = int_to_ptr.hbm [resolvable:$true] %s27
      %s29 = sshll.u32 [#allocation5], 4
      %s30 = int_to_ptr.vmem [resolvable:$true] %s29
      %32 = dma.hbm_to_vmem [thread:$0]  %s28, 32, %s30, [#allocation6]
    $region9: #{tpu_custom_call.1} parent=1 // pred_fallthru
      _
    // Predicated region
    $region10: #{tpu_custom_call.1} parent=1 // pred_check
      _
    $region11: #{tpu_custom_call.1} parent=1 // pred_check_branch
      %34 = sbr.rel (0) target = $region13
    $region12: #{tpu_custom_call.1} parent=1 // pred_region
      _
    $region13: #{tpu_custom_call.1} parent=1 // pred_fallthru
      _
    // Predicated region
    $region14: #{tpu_custom_call.1} parent=1 // pred_check
      _
    $region15: #{tpu_custom_call.1} parent=1 // pred_check_branch
      %36 = sbr.rel (0) target = $region17
    $region16: #{tpu_custom_call.1} parent=1 // pred_region
      %38 = dma.done [#allocation3], 32
    $region17: #{tpu_custom_call.1} parent=1 // pred_fallthru
      _
    // Predicated region
    $region18: #{tpu_custom_call.1} parent=1 // pred_check
      _
    $region19: #{tpu_custom_call.1} parent=1 // pred_check_branch
      %40 = sbr.rel (0) target = $region21
    $region20: #{tpu_custom_call.1} parent=1 // pred_region
      %42 = dma.done [#allocation6], 32
    $region21: #{tpu_custom_call.1} parent=1 // pred_fallthru
      _
    %v43 = vld [vmem:[#allocation2] sm:$0x3]
    %v44 = vunpack.c.l.bf16 %v43
    %v45 = vld [vmem:[#allocation5] sm:$0x3]
    %v46 = vunpack.c.l.bf16 %v45
    %v47 = vmul.f32 %v44, %v46
    %vm48 = vcmask 1043456
    %v49 = vsel %vm48, %v47, 0.0
    %v50 = vrot.slane %v49, 4
    %v51 = vadd.f32 %v49, %v50
    %v52 = vrot.slane %v51, 2
    %v53 = vadd.f32 %v51, %v52
    %v54 = vrot.slane %v53, 1
    %v55 = vadd.f32 %v53, %v54
    %v56 = vld [vmem:[%s2] sm:$0x1]
    %v57 = vadd.f32 %v55, %v56
    %v58 = vxor.u32 %v57, 2147483648
    %v59 = vmul.f32 %v58, 1.442695
    %v60 = vpow.pop %v59
    %v61 = vadd.f32 %v60, 1.0
    %v62 = vrcp.pop %v61
    %v63 = vmul.f32 %v61, %v62
    %v64 = vsub.f32 1.0, %v63
    %v65 = vmul.f32 %v62, %v64
    %v66 = vadd.f32 %v62, %v65
    %vm67 = vweird.f32 %v61
    %vm68 = vweird.f32 %v62
    %vm69 = vmor %vm67, %vm68
    %v70 = vsel %vm69, %v62, %v66
    %v71 = vand.u32 2147483647, %v61
    %vm72 = vcmp.eq.f32.partialorder %v71, 8.507059e+37
    %v73 = vand.u32 %v61, 2147483648
    %v74 = vor.u32 1.1754944e-38, %v73
    %v75 = vsel %vm72, %v74, %v70
    %v76 = vmul.f32 1.0, %v75
    %v77 = vmul.f32 %v76, 5.25
    %78 = vst [vmem:[#allocation7] sm:$0x1] %v77
    // Predicated region
    $region22: #{tpu_custom_call.1} parent=1 // pred_check
      _
    $region23: #{tpu_custom_call.1} parent=1 // pred_check_branch
      %80 = sbr.rel (0) target = $region25
    $region24: #{tpu_custom_call.1} parent=1 // pred_region
      %82 = vsyncadd [#allocation4], 0
      %s84 = sshll.u32 [#allocation7], 4
      %s85 = int_to_ptr.vmem [resolvable:$true] %s84
      %s86 = sshll.u32 %s3, 4
      %s87 = int_to_ptr.hbm [resolvable:$true] %s86
      %89 = dma.vmem_to_hbm [thread:$0]  %s85, 16, %s87, [#allocation4]
    $region25: #{tpu_custom_call.1} parent=1 // pred_fallthru
      _
    // Predicated region
    $region26: #{tpu_custom_call.1} parent=1 // pred_check
      _
    $region27: #{tpu_custom_call.1} parent=1 // pred_check_branch
      %91 = sbr.rel (0) target = $region29
    $region28: #{tpu_custom_call.1} parent=1 // pred_region
      %93 = dma.done [#allocation4], 16
    $region29: #{tpu_custom_call.1} parent=1 // pred_fallthru
      _
    %94 = vsyncpa [#allocation3], 1
    %95 = vsyncpa [#allocation6], 1
    %96 = vsyncpa [#allocation4], 1

</llo_original>
